<compile_context>
chip_gen: v5e
topology: v5e:2x2
jax: 0.10.0
libtpu: 0.0.40
codegen_flags: <defaults>
</compile_context>

<pallas_src>
import functools
import math

import jax
import jax.numpy as jnp
from jax.experimental import pallas as pl
from jax.experimental.pallas import tpu as pltpu


def _round_up(x, m):
    return (x + m - 1) // m * m


def _gelu_exact(h):
    # Exact erf GELU (PyTorch nn.GELU default).  Elementwise, so correct under
    # hidden-axis tiling.  Kept in f32 (v5e VPU/EUP have no bf16 path).
    return 0.5 * h * (1.0 + jax.lax.erf(h * (1.0 / math.sqrt(2.0))))


def _ffn_kernel_resident(x_ref, w1_ref, b1_ref, w2_ref, b2_ref, o_ref, *,
                         compute_dtype):
    # Whole hidden dim resident (n_k == 1): no accumulator scratch, weights are
    # DMA'd once (constant index maps) and reused by every token tile.
    x = x_ref[...].astype(compute_dtype)
    h = jnp.dot(x, w1_ref[...], preferred_element_type=jnp.float32)
    h = h + b1_ref[...].astype(jnp.float32)
    h = _gelu_exact(h)
    y = jnp.dot(h.astype(compute_dtype), w2_ref[...],
                preferred_element_type=jnp.float32)
    o_ref[...] = (y + b2_ref[...].astype(jnp.float32)).astype(o_ref.dtype)


def _ffn_kernel_streamed(x_ref, w1_ref, b1_ref, w2_ref, b2_ref, o_ref, acc_ref,
                         *, compute_dtype):
    # Hidden axis tiled (n_k > 1): W1/W2 slabs streamed, partial (tm, dim)
    # results accumulated in f32 VMEM scratch; b2 added exactly once at the end.
    k = pl.program_id(1)

    @pl.when(k == 0)
    def _():
        acc_ref[...] = jnp.zeros_like(acc_ref)

    x = x_ref[...].astype(compute_dtype)
    h = jnp.dot(x, w1_ref[...], preferred_element_type=jnp.float32)
    h = h + b1_ref[...].astype(jnp.float32)
    h = _gelu_exact(h)
    acc_ref[...] += jnp.dot(h.astype(compute_dtype), w2_ref[...],
                            preferred_element_type=jnp.float32)

    @pl.when(k == pl.num_programs(1) - 1)
    def _():
        o_ref[...] = (acc_ref[...] + b2_ref[...].astype(jnp.float32)
                      ).astype(o_ref.dtype)


def _vmem_capacity_bytes():
    try:
        info = pltpu.get_tpu_info()
        cap = int(getattr(info, "vmem_capacity_bytes", 0))
        if cap > 0:
            return cap
    except Exception:
        pass
    return 64 * 1024 * 1024  # conservative fallback: v7x per-TensorCore VMEM


def _estimate_vmem(tm, th, dim, hidden, x_isz, w_isz, out_isz, n_k):
    est = 2 * tm * dim * x_isz                       # x tile (double-buffered)
    est += 2 * dim * th * w_isz                      # W1 slab
    est += 2 * th * dim * w_isz                      # W2 slab
    est += 2 * 8 * _round_up(th, 128) * 4            # b1 slab (f32 upper bound)
    est += 2 * 8 * _round_up(dim, 128) * 4           # b2
    est += 2 * tm * dim * out_isz                    # output tile
    est += tm * th * 4                               # h intermediate (f32)
    if n_k > 1:
        est += tm * dim * 4                          # f32 accumulator scratch
    return est


def _choose_plan(n_rows, dim, hidden, x_isz, w_isz, out_isz, budget,
                 tm_max=1024, th_pref=512):
    # Token tile: multiple of 8, never larger than the row count (partial last
    # block is handled by Pallas masking), and softly capped so that once there
    # are >= 512 rows at least two token tiles exist (megacore / v7x 2-TC).
    tm_limit = min(tm_max, (n_rows // 8) * 8)
    if n_rows >= 512:
        tm_limit = min(tm_limit, max(512, _round_up((n_rows + 1) // 2, 8)))
    tm_limit = max(tm_limit, 8)
    tm_cands = sorted({min(t, tm_limit)
                       for t in (1024, 768, 512, 384, 256, 192, 128,
                                 64, 32, 16, 8)},
                      reverse=True)

    # Hidden tile: prefer the whole hidden dim (weights resident, DMA'd once);
    # otherwise the largest lane-aligned (multiple-of-128) divisor of hidden.
    # Never silently explode to th = hidden when it does not fit the budget.
    th_cands = [hidden]
    for pref in (th_pref, 512, 256, 128):
        c = (min(pref, hidden) // 128) * 128
        while c >= 128:
            if hidden % c == 0:
                if c != hidden and c not in th_cands:
                    th_cands.append(c)
                break
            c -= 128

    for th in th_cands:
        n_k = -(-hidden // th)
        # A weight-resident plan is only worth it with a reasonably fat token
        # tile; otherwise fall through to streaming with a larger tm.
        tm_floor = min(256, tm_limit) if (n_k == 1 and len(th_cands) > 1) else 8
        for tm in tm_cands:
            if tm < tm_floor:
                break
            if _estimate_vmem(tm, th, dim, hidden, x_isz, w_isz, out_isz,
                              n_k) <= budget:
                return tm, th, n_k
    th = th_cands[-1]
    return 8, th, -(-hidden // th)


def feed_forward_pallas(x, w1, b1, w2, b2, *, compute_dtype=jnp.bfloat16,
                        tm_max=1024, th_pref=512):
    """y = gelu(x @ w1 + b1) @ w2 + b2 (exact erf GELU), fused Pallas kernel.

    x: (..., dim); w1: (dim, hidden); b1: (hidden,); w2: (hidden, dim);
    b2: (dim,).  Returns x.shape / x.dtype.

    compute_dtype: dtype fed to the MXU (default bf16; accumulation is always
    f32).  With jnp.float32 the TPU MXU's default f32 precision is itself
    reduced-precision, so expect bf16-class accuracy on that path too.
    """
    orig_shape = x.shape
    orig_dtype = x.dtype
    dim = orig_shape[-1]
    hidden = w1.shape[1]
    assert w1.shape == (dim, hidden) and w2.shape == (hidden, dim)
    assert b1.shape == (hidden,) and b2.shape == (dim,)

    compute_dtype = jnp.dtype(compute_dtype)
    # Weights are DMA'd (and fed to the MXU) at compute_dtype width; x is cast
    # inside the kernel so no extra HBM pass over the activations is needed.
    w1 = w1.astype(compute_dtype)
    w2 = w2.astype(compute_dtype)
    b1_2d = b1.reshape(1, hidden)
    b2_2d = b2.reshape(1, dim)

    x2d = x.reshape(-1, dim)
    n_tok = x2d.shape[0]
    if n_tok < 8:  # only the degenerate tiny case gets a (cheap) pad
        x2d = jnp.pad(x2d, ((0, 8 - n_tok), (0, 0)))
    n_rows = x2d.shape[0]

    vmem_cap = int(_vmem_capacity_bytes() * 0.85)          # generation-aware
    budget = max(vmem_cap - (4 << 20), 16 << 20)
    x_isz = x2d.dtype.itemsize
    w_isz = compute_dtype.itemsize
    out_isz = jnp.dtype(orig_dtype).itemsize
    tm, th, n_k = _choose_plan(n_rows, dim, hidden, x_isz, w_isz, out_isz,
                               budget, tm_max=tm_max, th_pref=th_pref)
    n_m = pl.cdiv(n_rows, tm)

    est = _estimate_vmem(tm, th, dim, hidden, x_isz, w_isz, out_isz, n_k)
    vmem_limit = min(vmem_cap, max(32 << 20, est + (4 << 20)))

    if n_k == 1:
        kernel = functools.partial(_ffn_kernel_resident,
                                   compute_dtype=compute_dtype)
        grid = (n_m,)
        in_specs = [
            pl.BlockSpec((tm, dim), lambda i: (i, 0)),        # x tile
            pl.BlockSpec((dim, hidden), lambda i: (0, 0)),    # W1 (resident)
            pl.BlockSpec((1, hidden), lambda i: (0, 0)),      # b1
            pl.BlockSpec((hidden, dim), lambda i: (0, 0)),    # W2 (resident)
            pl.BlockSpec((1, dim), lambda i: (0, 0)),         # b2
        ]
        out_specs = pl.BlockSpec((tm, dim), lambda i: (i, 0))
        scratch_shapes = []
        dim_sem = ("parallel",)
    else:
        kernel = functools.partial(_ffn_kernel_streamed,
                                   compute_dtype=compute_dtype)
        grid = (n_m, n_k)  # reduction (hidden) axis last
        in_specs = [
            pl.BlockSpec((tm, dim), lambda i, k: (i, 0)),     # x tile
            pl.BlockSpec((dim, th), lambda i, k: (0, k)),     # W1 slab
            pl.BlockSpec((1, th), lambda i, k: (0, k)),       # b1 slab
            pl.BlockSpec((th, dim), lambda i, k: (k, 0)),     # W2 slab
            pl.BlockSpec((1, dim), lambda i, k: (0, 0)),      # b2
        ]
        out_specs = pl.BlockSpec((tm, dim), lambda i, k: (i, 0))
        scratch_shapes = [pltpu.VMEM((tm, dim), jnp.float32)]
        dim_sem = ("parallel", "arbitrary")

    out = pl.pallas_call(
        kernel,
        out_shape=jax.ShapeDtypeStruct((n_rows, dim), orig_dtype),
        grid_spec=pltpu.PrefetchScalarGridSpec(
            num_scalar_prefetch=0,
            grid=grid,
            in_specs=in_specs,
            out_specs=out_specs,
            scratch_shapes=scratch_shapes,
        ),
        compiler_params=pltpu.CompilerParams(
            dimension_semantics=dim_sem,
            vmem_limit_bytes=vmem_limit),
    )(x2d, w1, b1_2d, w2, b2_2d)

    out = out[:n_tok]
    return out.reshape(orig_shape)


def init_params(key, dim, hidden_dim, dtype=jnp.float32):
    """Deterministic init mirroring nn.Linear's U(-1/sqrt(fan_in), 1/sqrt(fan_in))."""
    k1, k2, k3, k4 = jax.random.split(key, 4)
    lim1 = 1.0 / math.sqrt(dim)
    lim2 = 1.0 / math.sqrt(hidden_dim)
    # Stored already transposed to (in, out) for the kernel's row-major matmul.
    w1 = jax.random.uniform(k1, (dim, hidden_dim), dtype, -lim1, lim1)
    b1 = jax.random.uniform(k2, (hidden_dim,), dtype, -lim1, lim1)
    w2 = jax.random.uniform(k3, (hidden_dim, dim), dtype, -lim2, lim2)
    b2 = jax.random.uniform(k4, (dim,), dtype, -lim2, lim2)
    return w1, b1, w2, b2


def feed_forward_ref(x, w1, b1, w2, b2):
    h = x @ w1 + b1
    h = jax.nn.gelu(h, approximate=False)
    return h @ w2 + b2


if __name__ == "__main__":
    key = jax.random.PRNGKey(0)
    kx, kp, kx2 = jax.random.split(key, 3)

    batch, seq, dim, hidden_dim = 2, 8, 16, 32
    x = jax.random.normal(kx, (batch, seq, dim), jnp.float32)
    w1, b1, w2, b2 = init_params(kp, dim, hidden_dim)
    ref = feed_forward_ref(x, w1, b1, w2, b2)

    # Default path: bf16 MXU inputs, f32 accumulation (bf16-class tolerance).
    out = jax.block_until_ready(feed_forward_pallas(x, w1, b1, w2, b2))
    assert out.shape == x.shape and out.dtype == x.dtype
    assert jnp.allclose(out, ref, atol=3e-2, rtol=3e-2)

    # f32 MXU path (default MXU precision => still bf16-class rounding).
    out32 = jax.block_until_ready(
        feed_forward_pallas(x, w1, b1, w2, b2, compute_dtype=jnp.float32))
    assert out32.shape == x.shape and out32.dtype == x.dtype
    assert jnp.allclose(out32, ref, atol=3e-2, rtol=3e-2)

    # Ragged token count (15 tokens): exercises the partial-last-block masking
    # path (no padded copy of x is materialized).
    x_odd = jax.random.normal(kx2, (3, 5, dim), jnp.float32)
    out_odd = jax.block_until_ready(feed_forward_pallas(x_odd, w1, b1, w2, b2))
    ref_odd = feed_forward_ref(x_odd, w1, b1, w2, b2)
    assert out_odd.shape == x_odd.shape
    assert jnp.allclose(out_odd, ref_odd, atol=3e-2, rtol=3e-2)

    print("KERNEL_OK")
</pallas_src>

<mosaic_0001>
module attributes {stable_mosaic.version = 11 : i64} {
  func.func @_ffn_kernel_resident(%arg0: i32, %arg1: memref<16x16xf32, #tpu.memory_space<vmem>>, %arg2: memref<16x32xbf16, #tpu.memory_space<vmem>>, %arg3: memref<1x32xf32, #tpu.memory_space<vmem>>, %arg4: memref<32x16xbf16, #tpu.memory_space<vmem>>, %arg5: memref<1x16xf32, #tpu.memory_space<vmem>>, %arg6: memref<16x16xf32, #tpu.memory_space<vmem>>) attributes {dimension_semantics = [#tpu.dimension_semantics<parallel>], iteration_bounds = array<i64: 1>, scalar_prefetch = 0 : i64, scratch_operands = 0 : i64, tpu.core_type = #tpu.core_type<tc>, window_params = [{transform_indices = @transform_0, window_bounds = array<i64: 16, 16>}, {pipeline_mode = #tpu.pipeline_mode<synchronous>, transform_indices = @transform_1, window_bounds = array<i64: 16, 32>}, {pipeline_mode = #tpu.pipeline_mode<synchronous>, transform_indices = @transform_2, window_bounds = array<i64: 1, 32>}, {pipeline_mode = #tpu.pipeline_mode<synchronous>, transform_indices = @transform_3, window_bounds = array<i64: 32, 16>}, {pipeline_mode = #tpu.pipeline_mode<synchronous>, transform_indices = @transform_4, window_bounds = array<i64: 1, 16>}, {transform_indices = @transform_5, window_bounds = array<i64: 16, 16>}]} {
    %c0 = arith.constant 0 : index
    %c0_0 = arith.constant 0 : index
    %0 = vector.load %arg1[%c0, %c0_0] : memref<16x16xf32, #tpu.memory_space<vmem>>, vector<16x16xf32>
    %1 = arith.truncf %0 : vector<16x16xf32> to vector<16x16xbf16>
    %c0_1 = arith.constant 0 : index
    %c0_2 = arith.constant 0 : index
    %2 = vector.load %arg2[%c0_1, %c0_2] : memref<16x32xbf16, #tpu.memory_space<vmem>>, vector<16x32xbf16>
    %cst = arith.constant dense<0.000000e+00> : vector<16x32xf32>
    %3 = tpu.matmul %1, %2, %cst {dimension_numbers = #tpu.dot_dimension_numbers<[1], [0], [0], [1], [0, 0, 1, 1], [], []>} : vector<16x16xbf16>, vector<16x32xbf16>, vector<16x32xf32> -> vector<16x32xf32>
    %c0_3 = arith.constant 0 : index
    %c0_4 = arith.constant 0 : index
    %4 = vector.load %arg3[%c0_3, %c0_4] : memref<1x32xf32, #tpu.memory_space<vmem>>, vector<1x32xf32>
    %5 = vector.broadcast %4 : vector<1x32xf32> to vector<16x32xf32>
    %6 = arith.addf %3, %5 : vector<16x32xf32>
    %cst_5 = arith.constant 5.000000e-01 : f32
    %7 = vector.broadcast %cst_5 : f32 to vector<16x32xf32>
    %8 = arith.mulf %7, %6 : vector<16x32xf32>
    %cst_6 = arith.constant 0.707106769 : f32
    %9 = vector.broadcast %cst_6 : f32 to vector<16x32xf32>
    %10 = arith.mulf %6, %9 : vector<16x32xf32>
    %11 = math.erf %10 : vector<16x32xf32>
    %cst_7 = arith.constant 1.000000e+00 : f32
    %12 = vector.broadcast %cst_7 : f32 to vector<16x32xf32>
    %13 = arith.addf %12, %11 : vector<16x32xf32>
    %14 = arith.mulf %8, %13 : vector<16x32xf32>
    %15 = arith.truncf %14 : vector<16x32xf32> to vector<16x32xbf16>
    %c0_8 = arith.constant 0 : index
    %c0_9 = arith.constant 0 : index
    %16 = vector.load %arg4[%c0_8, %c0_9] : memref<32x16xbf16, #tpu.memory_space<vmem>>, vector<32x16xbf16>
    %cst_10 = arith.constant dense<0.000000e+00> : vector<16x16xf32>
    %17 = tpu.matmul %15, %16, %cst_10 {dimension_numbers = #tpu.dot_dimension_numbers<[1], [0], [0], [1], [0, 0, 1, 1], [], []>} : vector<16x32xbf16>, vector<32x16xbf16>, vector<16x16xf32> -> vector<16x16xf32>
    %c0_11 = arith.constant 0 : index
    %c0_12 = arith.constant 0 : index
    %18 = vector.load %arg5[%c0_11, %c0_12] : memref<1x16xf32, #tpu.memory_space<vmem>>, vector<1x16xf32>
    %19 = vector.broadcast %18 : vector<1x16xf32> to vector<16x16xf32>
    %20 = arith.addf %17, %19 : vector<16x16xf32>
    %c0_13 = arith.constant 0 : index
    %c0_14 = arith.constant 0 : index
    %21 = vector.load %arg6[%c0_13, %c0_14] : memref<16x16xf32, #tpu.memory_space<vmem>>, vector<16x16xf32>
    tpu.vector_store %arg6[%c0_13, %c0_14], %20 {strides = array<i32>} : memref<16x16xf32, #tpu.memory_space<vmem>>, vector<16x16xf32>,
    return
  }
  func.func @transform_0(%arg0: i32) -> (i32, i32) {
    %c0_i32 = arith.constant 0 : i32
    %c0_i32_0 = arith.constant 0 : i32
    return %arg0, %c0_i32 : i32, i32
  }
  func.func @transform_1(%arg0: i32) -> (i32, i32) {
    %c0_i32 = arith.constant 0 : i32
    %c0_i32_0 = arith.constant 0 : i32
    %c0_i32_1 = arith.constant 0 : i32
    return %c0_i32, %c0_i32_0 : i32, i32
  }
  func.func @transform_2(%arg0: i32) -> (i32, i32) {
    %c0_i32 = arith.constant 0 : i32
    %c0_i32_0 = arith.constant 0 : i32
    %c0_i32_1 = arith.constant 0 : i32
    return %c0_i32, %c0_i32_0 : i32, i32
  }
  func.func @transform_3(%arg0: i32) -> (i32, i32) {
    %c0_i32 = arith.constant 0 : i32
    %c0_i32_0 = arith.constant 0 : i32
    %c0_i32_1 = arith.constant 0 : i32
    return %c0_i32, %c0_i32_0 : i32, i32
  }
  func.func @transform_4(%arg0: i32) -> (i32, i32) {
    %c0_i32 = arith.constant 0 : i32
    %c0_i32_0 = arith.constant 0 : i32
    %c0_i32_1 = arith.constant 0 : i32
    return %c0_i32, %c0_i32_0 : i32, i32
  }
  func.func @transform_5(%arg0: i32) -> (i32, i32) {
    %c0_i32 = arith.constant 0 : i32
    %c0_i32_0 = arith.constant 0 : i32
    return %arg0, %c0_i32 : i32, i32
  }
}

</mosaic_0001>

<llo_original>
// kernel: tpu_custom_call.1
$region0: #{tpu_custom_call.1}
  #allocation0 [shape = 'u32[]', space=smem, size = 0x4, offset = 0x4, fixed_abs, tag = 'smem constant byte address 0x4 - core index']
  #allocation1 [shape = 'u32[72,128]{1,0:T(1,128)}', space=vmem, size = 0x9000, scoped, tag = 'internal scratch']
  %s0 = inlined_call_operand.vmem [shape: f32[16,16], index: 0, kind: input, shape index: {}]
  %s1 = inlined_call_operand.vmem [shape: bf16[16,32], index: 1, kind: input, shape index: {}]
  %s2 = inlined_call_operand.vmem [shape: f32[1,32], index: 2, kind: input, shape index: {}]
  %s3 = inlined_call_operand.vmem [shape: bf16[32,16], index: 3, kind: input, shape index: {}]
  %s4 = inlined_call_operand.vmem [shape: f32[1,16], index: 4, kind: input, shape index: {}]
  %s5 = inlined_call_operand.hbm [shape: f32[16,16], index: 5, kind: output, shape index: {}]
  %s6 = sld [smem:[#allocation0]]
  $region30: #{tpu_custom_call.1} parent=0
    _
  %s8 = ssub.s32 1, %s6
  %s9 = scalar_select 0, %s8, %s6
  $region1: #{tpu_custom_call.1} parent=0
    #allocation2 [shape = 'u8[8192]{0}', space=vmem, size = 0x2000, scoped, tag = 'output window, operand 0, single buffered']
    #allocation3 [shape = 's32[1]{0}', space=sflag, size = 0x4, scoped, tag = 'scoped memory for tpu_custom_call.1']
    %10 = vsyncpa [#allocation3], 0
    // Predicated region
    $region2: #{tpu_custom_call.1} parent=1 // pred_check
      _
    $region3: #{tpu_custom_call.1} parent=1 // pred_check_branch
      %12 = sbr.rel (0) target = $region5
    $region4: #{tpu_custom_call.1} parent=1 // pred_region
      _
    $region5: #{tpu_custom_call.1} parent=1 // pred_fallthru
      _
    // Predicated region
    $region6: #{tpu_custom_call.1} parent=1 // pred_check
      _
    $region7: #{tpu_custom_call.1} parent=1 // pred_check_branch
      %14 = sbr.rel (0) target = $region9
    $region8: #{tpu_custom_call.1} parent=1 // pred_region
      _
    $region9: #{tpu_custom_call.1} parent=1 // pred_fallthru
      _
    // Predicated region
    $region10: #{tpu_custom_call.1} parent=1 // pred_check
      _
    $region11: #{tpu_custom_call.1} parent=1 // pred_check_branch
      %16 = sbr.rel (0) target = $region13
    $region12: #{tpu_custom_call.1} parent=1 // pred_region
      _
    $region13: #{tpu_custom_call.1} parent=1 // pred_fallthru
      _
    // Predicated region
    $region14: #{tpu_custom_call.1} parent=1 // pred_check
      _
    $region15: #{tpu_custom_call.1} parent=1 // pred_check_branch
      %18 = sbr.rel (0) target = $region17
    $region16: #{tpu_custom_call.1} parent=1 // pred_region
      _
    $region17: #{tpu_custom_call.1} parent=1 // pred_fallthru
      _
    // Predicated region
    $region18: #{tpu_custom_call.1} parent=1 // pred_check
      _
    $region19: #{tpu_custom_call.1} parent=1 // pred_check_branch
      %20 = sbr.rel (0) target = $region21
    $region20: #{tpu_custom_call.1} parent=1 // pred_region
      _
    $region21: #{tpu_custom_call.1} parent=1 // pred_fallthru
      _
    %v22 = vld [vmem:[%s0] sm:$0xff]
    %v23 = vld [vmem:[%s0 + $0x8] sm:$0xff]
    %v24 = vpack.c.bf16 %v23, %v22
    %v25 = vld [vmem:[%s1] sm:$0xf]
    %v26 = vld [vmem:[%s1 + $0x4] sm:$0xf]
    %v27 = vld [vmem:[%s2] sm:$0x1]
    %v29 = vperm.slane %v27, 0
    %v33 = vunpack.c.l.b16 %v25
    %v34 = vunpack.c.l.b16 %v26
    %v35 = vpack.c.b16 %v34, %v33
    %vm37 = vcmask 130048
    %v39 = vsel %vm37, %v24, 0
    %41 = vmatpush.bf16.msra.mxu0 0
    %42 = vmatpush.bf16.msra.mxu0 0
    %43 = vmatpush.bf16.msra.mxu0 0
    %44 = vmatpush.bf16.msra.mxu0 0
    %45 = vmatpush.bf16.msra.mxu0 0
    %46 = vmatpush.bf16.msra.mxu0 0
    %47 = vmatpush.bf16.msra.mxu0 0
    %48 = vmatpush.bf16.msra.mxu0 %v35
    %49 = vmatmul.bf16.gmra.mxu0 %v39
    %v50 = vpop.f32.mrf.mxu0
    %v51 = vadd.f32 %v29, %v50
    %v52 = vpop.f32.mrf.mxu0
    %v53 = vadd.f32 %v29, %v52
    %54 = vdwg.mxu0
    %v55 = vmul.f32 %v51, 0.5
    %v56 = vmul.f32 %v53, 0.5
    %v57 = vmul.f32 %v51, 0.70710677
    %v58 = vmul.f32 %v53, 0.70710677
    %v59 = vmul.f32 %v57, %v57
    %v60 = vmin.f32 16.0, %v59
    %v61 = vmul.f32 %v60, 2.1237322e-06
    %v62 = vadd.f32 %v61, 0.00028619796
    %v63 = vmul.f32 %v60, %v62
    %v64 = vadd.f32 %v63, 0.0036580483
    %v65 = vmul.f32 %v60, %v64
    %v66 = vadd.f32 %v65, 0.05243302
    %v67 = vmul.f32 %v60, %v66
    %v68 = vadd.f32 %v67, 0.18741608
    %v69 = vmul.f32 %v60, %v68
    %v70 = vadd.f32 %v69, 1.1283791
    %v71 = vmul.f32 %v57, %v70
    %v72 = vmul.f32 %v60, 3.8918573e-05
    %v73 = vadd.f32 %v72, 0.001143296
    %v74 = vmul.f32 %v60, %v73
    %v75 = vadd.f32 %v74, 0.014752088
    %v76 = vmul.f32 %v60, %v75
    %v77 = vadd.f32 %v76, 0.112945676
    %v78 = vmul.f32 %v60, %v77
    %v79 = vadd.f32 %v78, 0.4994258
    %v80 = vmul.f32 %v60, %v79
    %v81 = vadd.f32 %v80, 1.0
    %v82 = vrcp.pop %v81
    %v83 = vmul.f32 %v81, %v82
    %v84 = vsub.f32 1.0, %v83
    %v85 = vmul.f32 %v82, %v84
    %v86 = vadd.f32 %v82, %v85
    %vm87 = vweird.f32 %v81
    %vm88 = vweird.f32 %v82
    %vm89 = vmor %vm87, %vm88
    %v90 = vsel %vm89, %v82, %v86
    %v91 = vand.u32 2147483647, %v81
    %vm92 = vcmp.eq.f32.partialorder %v91, 8.507059e+37
    %v93 = vand.u32 %v81, 2147483648
    %v94 = vor.u32 1.1754944e-38, %v93
    %v95 = vsel %vm92, %v94, %v90
    %v96 = vmul.f32 %v71, %v95
    %v97 = vmin.f32 %v96, 1.0
    %v98 = vmax.f32 %v97, -1.0
    %v99 = vmul.f32 %v58, %v58
    %v100 = vmin.f32 16.0, %v99
    %v101 = vmul.f32 %v100, 2.1237322e-06
    %v102 = vadd.f32 %v101, 0.00028619796
    %v103 = vmul.f32 %v100, %v102
    %v104 = vadd.f32 %v103, 0.0036580483
    %v105 = vmul.f32 %v100, %v104
    %v106 = vadd.f32 %v105, 0.05243302
    %v107 = vmul.f32 %v100, %v106
    %v108 = vadd.f32 %v107, 0.18741608
    %v109 = vmul.f32 %v100, %v108
    %v110 = vadd.f32 %v109, 1.1283791
    %v111 = vmul.f32 %v58, %v110
    %v112 = vmul.f32 %v100, 3.8918573e-05
    %v113 = vadd.f32 %v112, 0.001143296
    %v114 = vmul.f32 %v100, %v113
    %v115 = vadd.f32 %v114, 0.014752088
    %v116 = vmul.f32 %v100, %v115
    %v117 = vadd.f32 %v116, 0.112945676
    %v118 = vmul.f32 %v100, %v117
    %v119 = vadd.f32 %v118, 0.4994258
    %v120 = vmul.f32 %v100, %v119
    %v121 = vadd.f32 %v120, 1.0
    %v122 = vrcp.pop %v121
    %v123 = vmul.f32 %v121, %v122
    %v124 = vsub.f32 1.0, %v123
    %v125 = vmul.f32 %v122, %v124
    %v126 = vadd.f32 %v122, %v125
    %vm127 = vweird.f32 %v121
    %vm128 = vweird.f32 %v122
    %vm129 = vmor %vm127, %vm128
    %v130 = vsel %vm129, %v122, %v126
    %v131 = vand.u32 2147483647, %v121
    %vm132 = vcmp.eq.f32.partialorder %v131, 8.507059e+37
    %v133 = vand.u32 %v121, 2147483648
    %v134 = vor.u32 1.1754944e-38, %v133
    %v135 = vsel %vm132, %v134, %v130
    %v136 = vmul.f32 %v111, %v135
    %v137 = vmin.f32 %v136, 1.0
    %v138 = vmax.f32 %v137, -1.0
    %v139 = vadd.f32 %v98, 1.0
    %v140 = vadd.f32 %v138, 1.0
    %v141 = vmul.f32 %v55, %v139
    %v142 = vmul.f32 %v56, %v140
    %v143 = vpack.c.bf16 %v142, %v141
    %v144 = vld [vmem:[%s3] sm:$0xf]
    %v145 = vld [vmem:[%s3 + $0x4] sm:$0xf]
    %v146 = vld [vmem:[%s3 + $0x8] sm:$0xf]
    %v147 = vld [vmem:[%s3 + $0xc] sm:$0xf]
    %v148 = vld [vmem:[%s4] sm:$0x1]
    %v150 = vperm.slane %v148, 0
    %v156 = vunpack.c.l.b16 %v144
    %v157 = vunpack.c.l.b16 %v145
    %v158 = vunpack.c.l.b16 %v146
    %v159 = vunpack.c.l.b16 %v147
    %v160 = vpack.c.b16 %v157, %v156
    %v161 = vpack.c.b16 %v159, %v158
    %vm164 = vcmask 261120
    %v166 = vsel %vm164, %v143, 0
    %168 = vmatpush.bf16.msra.mxu0 0
    %169 = vmatpush.bf16.msra.mxu0 0
    %170 = vmatpush.bf16.msra.mxu0 0
    %171 = vmatpush.bf16.msra.mxu0 0
    %172 = vmatpush.bf16.msra.mxu0 0
    %173 = vmatpush.bf16.msra.mxu0 0
    %174 = vmatpush.bf16.msra.mxu0 %v161
    %175 = vmatpush.bf16.msra.mxu0 %v160
    %176 = vmatmul.bf16.gmra.mxu0 %v166
    %v177 = vpop.f32.mrf.mxu0
    %v178 = vadd.f32 %v150, %v177
    %v179 = vpop.f32.mrf.mxu0
    %v180 = vadd.f32 %v150, %v179
    %181 = vdwg.mxu0
    %182 = vst.msk [vmem:[#allocation2] sm:$0xff] %vm37, %v178
    %183 = vst.msk [vmem:[#allocation2 + $0x8] sm:$0xff] %vm37, %v180
    // Predicated region
    $region22: #{tpu_custom_call.1} parent=1 // pred_check
      _
    $region23: #{tpu_custom_call.1} parent=1 // pred_check_branch
      %185 = sbr.rel (0) target = $region25
    $region24: #{tpu_custom_call.1} parent=1 // pred_region
      %187 = vsyncadd [#allocation3], 0
      %s188 = sshll.u32 [#allocation2], 4
      %s189 = int_to_ptr.vmem [resolvable:$true] %s188
      %s190 = sshll.u32 %s5, 4
      %s191 = int_to_ptr.hbm [resolvable:$true] %s190
      %196 = dma.vmem_to_hbm [thread:$0]  %s189, 256, %s191, [#allocation3], 128, 128, 8
    $region25: #{tpu_custom_call.1} parent=1 // pred_fallthru
      _
    // Predicated region
    $region26: #{tpu_custom_call.1} parent=1 // pred_check
      _
    $region27: #{tpu_custom_call.1} parent=1 // pred_check_branch
      %198 = sbr.rel (0) target = $region29
    $region28: #{tpu_custom_call.1} parent=1 // pred_region
      %200 = dma.done [#allocation3], 256
    $region29: #{tpu_custom_call.1} parent=1 // pred_fallthru
      _
    %201 = vsyncpa [#allocation3], 1

</llo_original>
